<compile_context>
chip_gen: v5e
topology: v5e:2x2
jax: 0.10.0
libtpu: 0.0.40
codegen_flags: <defaults>
</compile_context>

<pallas_src>
import jax
import jax.numpy as jnp
from jax.experimental import pallas as pl
from jax.experimental.pallas import tpu as pltpu


_INV_SQRT2 = 0.7071067811865476


def _round_up(x, m):
    return (x + m - 1) // m * m


def _gelu_exact(h):
    # Exact erf GELU (PyTorch nn.GELU() default), computed in f32.
    return h * (0.5 * (1.0 + jax.lax.erf(h * jnp.float32(_INV_SQRT2))))


# --------------------------------- kernels ---------------------------------


def _mlp_kernel_resident(x_ref, w1_ref, b1_ref, w2_ref, b2_ref, o_ref):
    # Whole hidden dim in one chunk; weights stay VMEM-resident for the grid.
    h = jnp.dot(x_ref[...], w1_ref[...], preferred_element_type=jnp.float32)
    h = h + b1_ref[...].astype(jnp.float32)
    h = _gelu_exact(h)
    out = jnp.dot(h.astype(w2_ref.dtype), w2_ref[...],
                  preferred_element_type=jnp.float32)
    out = out + b2_ref[...].astype(jnp.float32)
    o_ref[...] = out.astype(o_ref.dtype)


def _mlp_kernel_streamed(x_ref, w1_ref, b1_ref, w2_ref, b2_ref, o_ref,
                         acc_ref=None):
    # Hidden dim streamed as the trailing "arbitrary" grid axis. fc2 partial
    # sums accumulate either in an f32 scratch (sub-32-bit outputs) or
    # directly into the resident f32 output block.
    acc = o_ref if acc_ref is None else acc_ref
    j = pl.program_id(1)

    @pl.when(j == 0)
    def _():
        # Hoisted fc2 bias: initialize the accumulator with b2.
        acc[...] = jnp.broadcast_to(b2_ref[...].astype(acc.dtype), acc.shape)

    h = jnp.dot(x_ref[...], w1_ref[...], preferred_element_type=jnp.float32)
    h = h + b1_ref[...].astype(jnp.float32)
    h = _gelu_exact(h)
    acc[...] += jnp.dot(h.astype(w2_ref.dtype), w2_ref[...],
                        preferred_element_type=jnp.float32).astype(acc.dtype)

    if acc_ref is not None:
        @pl.when(j == pl.num_programs(1) - 1)
        def _():
            o_ref[...] = acc_ref[...].astype(o_ref.dtype)


# ------------------------------ configuration ------------------------------


def _tpu_generation():
    try:
        kind = jax.devices()[0].device_kind.lower()
    except Exception:
        kind = ""
    if "v5 lite" in kind or "v5e" in kind or "v5lite" in kind:
        return "v5e"
    if "v6" in kind:
        return "v6e"
    if "v7" in kind:
        return "v7x"
    return "unknown"


def _vmem_capacity_bytes(gen):
    try:
        cap = int(pltpu.get_tpu_info().vmem_capacity_bytes)
        if cap > 0:
            return cap
    except Exception:
        pass
    return {"v5e": 128 << 20, "v6e": 128 << 20, "v7x": 64 << 20}.get(gen, 64 << 20)


def _resident_footprint(tm, d, k, it):
    fp = 4 * tm * d * it                 # x + out tiles, double-buffered
    fp += 2 * 2 * d * k * it             # W1 + W2 (conservative 2x buffers)
    fp += 4 * (k + d) * it               # biases
    fp += tm * k * 4                     # h temp in f32
    if it < 4:
        fp += tm * k * it                # h cast for the fc2 MXU operand
    return fp


def _streamed_footprint(tm, tk, d, it, wb):
    fp = 4 * tm * d * it                 # x + out tiles, double-buffered
    fp += wb * (2 * d * tk + tk) * it    # W1/W2/b1 chunks, wb-deep buffers
    fp += 4 * d * it                     # b2
    fp += tm * tk * 4                    # h temp in f32
    if it < 4:
        fp += tm * tk * it               # h cast
        fp += tm * d * 4                 # f32 accumulator scratch
    return fp


def _pick_tm(n, target, sub, want_two_tiles):
    n_al = _round_up(max(n, 1), sub)
    target = max(sub, target // sub * sub)
    if n_al <= target:
        tm = n_al
        if want_two_tiles and tm > sub:
            # Split into two row tiles so both v7x TensorCores get work.
            half = _round_up((n_al + 1) // 2, sub)
            if half < n_al:
                tm = half
        return tm
    cands = [c for c in (640, 512, 448, 384, 320, 256, 192, 128, 96, 64, 48,
                         32, 24, 16, 8)
             if sub <= c <= target and c % sub == 0]
    if target not in cands:
        cands.append(target)
    # Minimize row padding; ties broken toward the larger tile.
    return min(cands, key=lambda c: (_round_up(n, c) - n, -c))


def _choose_config(n, d, mlp_dim, itemsize, gen):
    cap = _vmem_capacity_bytes(gen)
    budget = max(16 << 20, min(cap - (12 << 20), int(cap * 0.85)))
    sub = {4: 8, 2: 16, 1: 32}.get(itemsize, 8)
    target_tm = 256 if itemsize >= 4 else 512
    if gen == "v5e":
        target_tm = 256

    tm = _pick_tm(n, target_tm, sub, want_two_tiles=(gen == "v7x"))

    # Weights-resident fast path: W1/W2 DMA'd from HBM exactly once.
    tm_r = tm
    fp = _resident_footprint(tm_r, d, mlp_dim, itemsize)
    while fp > budget and tm_r > sub:
        tm_r = max(sub, _round_up(tm_r // 2, sub))
        fp = _resident_footprint(tm_r, d, mlp_dim, itemsize)
    if fp <= budget and tm_r >= min(tm, 128):
        return dict(mode="resident", tm=tm_r, tk=mlp_dim, wb=2,
                    footprint=fp, budget=budget, cap=cap)

    # Streamed path: lane-aligned hidden chunks, deeper weight buffering when
    # the budget allows (not on v7x); shrink wb -> tk -> tm until it fits.
    tk = 512 if gen == "v6e" else 256
    tk = min(tk, _round_up(mlp_dim, 128))
    wb = 2 if gen == "v7x" else 3
    tm_s = tm
    while True:
        fp = _streamed_footprint(tm_s, tk, d, itemsize, wb)
        if fp <= budget:
            break
        if wb > 2:
            wb = 2
        elif tk > 128:
            tk = max(128, _round_up(tk // 2, 128))
        elif tm_s > sub:
            tm_s = max(sub, _round_up(tm_s // 2, sub))
        else:
            break
    return dict(mode="streamed", tm=tm_s, tk=tk, wb=wb,
                footprint=fp, budget=budget, cap=cap)


# --------------------------------- wrapper ----------------------------------


def mlp_block(x, w1, b1, w2, b2, *, vmem_limit_bytes=None, interpret=False):
    """Fused MLP forward: fc2(gelu(fc1(x))), torch nn.Linear weight layout.

    x: [..., input_dim]; w1: [mlp_dim, input_dim]; b1: [mlp_dim];
    w2: [input_dim, mlp_dim]; b2: [input_dim].
    """
    input_dim = x.shape[-1]
    mlp_dim = w1.shape[0]
    orig_shape = x.shape
    out_dtype = x.dtype

    x2d = x.reshape(-1, input_dim)
    n = x2d.shape[0]
    itemsize = jnp.dtype(x.dtype).itemsize
    w_itemsize = jnp.dtype(w1.dtype).itemsize

    gen = _tpu_generation()
    cfg = _choose_config(n, input_dim, mlp_dim, itemsize, gen)
    mode, tm, tk, wb = cfg["mode"], cfg["tm"], cfg["tk"], cfg["wb"]

    n_pad = _round_up(n, tm)
    if n_pad != n:
        x2d = jnp.pad(x2d, ((0, n_pad - n), (0, 0)))
    row_tiles = n_pad // tm

    # Pre-transpose to plain x @ W layout (torch weight is (out, in)).
    w1_t = w1.T                        # (input_dim, mlp_dim)
    w2_t = w2.T                        # (mlp_dim, input_dim)
    b1_2d = b1.reshape(1, mlp_dim)
    b2_2d = b2.reshape(1, input_dim)

    if vmem_limit_bytes is None:
        vmem_limit_bytes = int(min(cfg["cap"] - (8 << 20),
                                   max(cfg["footprint"] + (4 << 20),
                                       32 << 20)))

    if mode == "resident":
        k_pad = mlp_dim
        grid = (row_tiles,)
        in_specs = [
            pl.BlockSpec((tm, input_dim), lambda i: (i, 0)),          # x rows
            pl.BlockSpec((input_dim, mlp_dim), lambda i: (0, 0)),     # W1
            pl.BlockSpec((1, mlp_dim), lambda i: (0, 0)),             # b1
            pl.BlockSpec((mlp_dim, input_dim), lambda i: (0, 0)),     # W2
            pl.BlockSpec((1, input_dim), lambda i: (0, 0)),           # b2
        ]
        out_specs = pl.BlockSpec((tm, input_dim), lambda i: (i, 0))
        scratch_shapes = []
        kernel = _mlp_kernel_resident
        dim_sem = ("parallel",)
        weight_reads = 1
    else:
        k_pad = _round_up(mlp_dim, tk)
        if k_pad != mlp_dim:
            # Zero padding of the hidden axis is exact: gelu(0)=0 and padded
            # W2 rows are zero, so padded hidden units contribute nothing.
            w1_t = jnp.pad(w1_t, ((0, 0), (0, k_pad - mlp_dim)))
            b1_2d = jnp.pad(b1_2d, ((0, 0), (0, k_pad - mlp_dim)))
            w2_t = jnp.pad(w2_t, ((0, k_pad - mlp_dim), (0, 0)))
        grid = (row_tiles, k_pad // tk)
        wkw = dict(pipeline_mode=pl.Buffered(wb)) if wb != 2 else {}
        in_specs = [
            pl.BlockSpec((tm, input_dim), lambda i, j: (i, 0)),        # x rows
            pl.BlockSpec((input_dim, tk), lambda i, j: (0, j), **wkw), # W1 chunk
            pl.BlockSpec((1, tk), lambda i, j: (0, j)),                # b1 chunk
            pl.BlockSpec((tk, input_dim), lambda i, j: (j, 0), **wkw), # W2 chunk
            pl.BlockSpec((1, input_dim), lambda i, j: (0, 0)),         # b2
        ]
        out_specs = pl.BlockSpec((tm, input_dim), lambda i, j: (i, 0))
        # f32 outputs accumulate directly in the resident output block; only
        # sub-32-bit outputs need a separate f32 accumulator.
        scratch_shapes = ([] if itemsize >= 4
                          else [pltpu.VMEM((tm, input_dim), jnp.float32)])
        kernel = _mlp_kernel_streamed
        dim_sem = ("parallel", "arbitrary")
        weight_reads = row_tiles

    cost = pl.CostEstimate(
        flops=2 * 2 * n_pad * input_dim * k_pad,            # fc1 + fc2
        transcendentals=n_pad * k_pad,                      # erf per hidden elt
        bytes_accessed=int(
            n_pad * input_dim * itemsize                    # x read
            + weight_reads * (w1_t.size + w2_t.size + b1_2d.size) * w_itemsize
            + b2_2d.size * w_itemsize
            + n_pad * input_dim * itemsize),                # out write
    )

    out = pl.pallas_call(
        kernel,
        out_shape=jax.ShapeDtypeStruct((n_pad, input_dim), out_dtype),
        grid_spec=pltpu.PrefetchScalarGridSpec(
            num_scalar_prefetch=0,
            grid=grid,
            in_specs=in_specs,
            out_specs=out_specs,
            scratch_shapes=scratch_shapes,
        ),
        compiler_params=pltpu.CompilerParams(
            dimension_semantics=dim_sem,
            vmem_limit_bytes=vmem_limit_bytes,
        ),
        cost_estimate=cost,
        interpret=interpret,
    )(x2d, w1_t, b1_2d, w2_t, b2_2d)

    return out[:n].reshape(orig_shape)


if __name__ == "__main__":
    # Small shapes consistent with the module.
    batch, seq, input_dim, mlp_dim = 2, 8, 16, 32

    key = jax.random.PRNGKey(0)
    kx, k1, k2, k3, k4 = jax.random.split(key, 5)

    x = jax.random.normal(kx, (batch, seq, input_dim), dtype=jnp.float32)

    # PyTorch nn.Linear shapes: weight = (out_features, in_features).
    w1 = jax.random.normal(k1, (mlp_dim, input_dim), dtype=jnp.float32) * 0.1
    b1 = jax.random.normal(k2, (mlp_dim,), dtype=jnp.float32) * 0.1
    w2 = jax.random.normal(k3, (input_dim, mlp_dim), dtype=jnp.float32) * 0.1
    b2 = jax.random.normal(k4, (input_dim,), dtype=jnp.float32) * 0.1

    out = mlp_block(x, w1, b1, w2, b2)
    out = jax.block_until_ready(out)

    # Pure-JAX reference (exact erf GELU, matching nn.GELU()).
    h_ref = x @ w1.T + b1
    h_ref = 0.5 * h_ref * (1.0 + jax.lax.erf(h_ref / jnp.sqrt(2.0)))
    ref = h_ref @ w2.T + b2
    assert jnp.allclose(out, ref, atol=1e-5, rtol=1e-5)

    print("KERNEL_OK")
</pallas_src>

<mosaic_0001>
module attributes {stable_mosaic.version = 11 : i64} {
  func.func @_mlp_kernel_resident(%arg0: i32, %arg1: memref<16x16xf32, #tpu.memory_space<vmem>>, %arg2: memref<16x32xf32, #tpu.memory_space<vmem>>, %arg3: memref<1x32xf32, #tpu.memory_space<vmem>>, %arg4: memref<32x16xf32, #tpu.memory_space<vmem>>, %arg5: memref<1x16xf32, #tpu.memory_space<vmem>>, %arg6: memref<16x16xf32, #tpu.memory_space<vmem>>) attributes {dimension_semantics = [#tpu.dimension_semantics<parallel>], iteration_bounds = array<i64: 1>, scalar_prefetch = 0 : i64, scratch_operands = 0 : i64, tpu.core_type = #tpu.core_type<tc>, window_params = [{transform_indices = @transform_0, window_bounds = array<i64: 16, 16>}, {pipeline_mode = #tpu.pipeline_mode<synchronous>, transform_indices = @transform_1, window_bounds = array<i64: 16, 32>}, {pipeline_mode = #tpu.pipeline_mode<synchronous>, transform_indices = @transform_2, window_bounds = array<i64: 1, 32>}, {pipeline_mode = #tpu.pipeline_mode<synchronous>, transform_indices = @transform_3, window_bounds = array<i64: 32, 16>}, {pipeline_mode = #tpu.pipeline_mode<synchronous>, transform_indices = @transform_4, window_bounds = array<i64: 1, 16>}, {transform_indices = @transform_5, window_bounds = array<i64: 16, 16>}]} {
    %c0 = arith.constant 0 : index
    %c0_0 = arith.constant 0 : index
    %0 = vector.load %arg1[%c0, %c0_0] : memref<16x16xf32, #tpu.memory_space<vmem>>, vector<16x16xf32>
    %c0_1 = arith.constant 0 : index
    %c0_2 = arith.constant 0 : index
    %1 = vector.load %arg2[%c0_1, %c0_2] : memref<16x32xf32, #tpu.memory_space<vmem>>, vector<16x32xf32>
    %cst = arith.constant dense<0.000000e+00> : vector<16x32xf32>
    %2 = tpu.matmul %0, %1, %cst {dimension_numbers = #tpu.dot_dimension_numbers<[1], [0], [0], [1], [0, 0, 1, 1], [], []>} : vector<16x16xf32>, vector<16x32xf32>, vector<16x32xf32> -> vector<16x32xf32>
    %c0_3 = arith.constant 0 : index
    %c0_4 = arith.constant 0 : index
    %3 = vector.load %arg3[%c0_3, %c0_4] : memref<1x32xf32, #tpu.memory_space<vmem>>, vector<1x32xf32>
    %4 = vector.broadcast %3 : vector<1x32xf32> to vector<16x32xf32>
    %5 = arith.addf %2, %4 : vector<16x32xf32>
    %cst_5 = arith.constant 0.707106769 : f32
    %6 = vector.broadcast %cst_5 : f32 to vector<16x32xf32>
    %7 = arith.mulf %5, %6 : vector<16x32xf32>
    %8 = math.erf %7 : vector<16x32xf32>
    %cst_6 = arith.constant 1.000000e+00 : f32
    %9 = vector.broadcast %cst_6 : f32 to vector<16x32xf32>
    %10 = arith.addf %9, %8 : vector<16x32xf32>
    %cst_7 = arith.constant 5.000000e-01 : f32
    %11 = vector.broadcast %cst_7 : f32 to vector<16x32xf32>
    %12 = arith.mulf %11, %10 : vector<16x32xf32>
    %13 = arith.mulf %5, %12 : vector<16x32xf32>
    %c0_8 = arith.constant 0 : index
    %c0_9 = arith.constant 0 : index
    %14 = vector.load %arg4[%c0_8, %c0_9] : memref<32x16xf32, #tpu.memory_space<vmem>>, vector<32x16xf32>
    %cst_10 = arith.constant dense<0.000000e+00> : vector<16x16xf32>
    %15 = tpu.matmul %13, %14, %cst_10 {dimension_numbers = #tpu.dot_dimension_numbers<[1], [0], [0], [1], [0, 0, 1, 1], [], []>} : vector<16x32xf32>, vector<32x16xf32>, vector<16x16xf32> -> vector<16x16xf32>
    %c0_11 = arith.constant 0 : index
    %c0_12 = arith.constant 0 : index
    %16 = vector.load %arg5[%c0_11, %c0_12] : memref<1x16xf32, #tpu.memory_space<vmem>>, vector<1x16xf32>
    %17 = vector.broadcast %16 : vector<1x16xf32> to vector<16x16xf32>
    %18 = arith.addf %15, %17 : vector<16x16xf32>
    %c0_13 = arith.constant 0 : index
    %c0_14 = arith.constant 0 : index
    %19 = vector.load %arg6[%c0_13, %c0_14] : memref<16x16xf32, #tpu.memory_space<vmem>>, vector<16x16xf32>
    tpu.vector_store %arg6[%c0_13, %c0_14], %18 {strides = array<i32>} : memref<16x16xf32, #tpu.memory_space<vmem>>, vector<16x16xf32>,
    return
  }
  func.func @transform_0(%arg0: i32) -> (i32, i32) {
    %c0_i32 = arith.constant 0 : i32
    %c0_i32_0 = arith.constant 0 : i32
    return %arg0, %c0_i32 : i32, i32
  }
  func.func @transform_1(%arg0: i32) -> (i32, i32) {
    %c0_i32 = arith.constant 0 : i32
    %c0_i32_0 = arith.constant 0 : i32
    %c0_i32_1 = arith.constant 0 : i32
    return %c0_i32, %c0_i32_0 : i32, i32
  }
  func.func @transform_2(%arg0: i32) -> (i32, i32) {
    %c0_i32 = arith.constant 0 : i32
    %c0_i32_0 = arith.constant 0 : i32
    %c0_i32_1 = arith.constant 0 : i32
    return %c0_i32, %c0_i32_0 : i32, i32
  }
  func.func @transform_3(%arg0: i32) -> (i32, i32) {
    %c0_i32 = arith.constant 0 : i32
    %c0_i32_0 = arith.constant 0 : i32
    %c0_i32_1 = arith.constant 0 : i32
    return %c0_i32, %c0_i32_0 : i32, i32
  }
  func.func @transform_4(%arg0: i32) -> (i32, i32) {
    %c0_i32 = arith.constant 0 : i32
    %c0_i32_0 = arith.constant 0 : i32
    %c0_i32_1 = arith.constant 0 : i32
    return %c0_i32, %c0_i32_0 : i32, i32
  }
  func.func @transform_5(%arg0: i32) -> (i32, i32) {
    %c0_i32 = arith.constant 0 : i32
    %c0_i32_0 = arith.constant 0 : i32
    return %arg0, %c0_i32 : i32, i32
  }
}

</mosaic_0001>

<llo_original>
// kernel: tpu_custom_call.1
$region0: #{tpu_custom_call.1}
  #allocation0 [shape = 'u32[]', space=smem, size = 0x4, offset = 0x4, fixed_abs, tag = 'smem constant byte address 0x4 - core index']
  #allocation1 [shape = 'u32[72,128]{1,0:T(1,128)}', space=vmem, size = 0x9000, scoped, tag = 'internal scratch']
  %s0 = inlined_call_operand.vmem [shape: f32[16,16], index: 0, kind: input, shape index: {}]
  %s1 = inlined_call_operand.vmem [shape: f32[16,32], index: 1, kind: input, shape index: {}]
  %s2 = inlined_call_operand.vmem [shape: f32[1,32], index: 2, kind: input, shape index: {}]
  %s3 = inlined_call_operand.vmem [shape: f32[32,16], index: 3, kind: input, shape index: {}]
  %s4 = inlined_call_operand.vmem [shape: f32[1,16], index: 4, kind: input, shape index: {}]
  %s5 = inlined_call_operand.hbm [shape: f32[16,16], index: 5, kind: output, shape index: {}]
  %s6 = sld [smem:[#allocation0]]
  $region30: #{tpu_custom_call.1} parent=0
    _
  %s8 = ssub.s32 1, %s6
  %s9 = scalar_select 0, %s8, %s6
  $region1: #{tpu_custom_call.1} parent=0
    #allocation2 [shape = 'u8[8192]{0}', space=vmem, size = 0x2000, scoped, tag = 'output window, operand 0, single buffered']
    #allocation3 [shape = 's32[1]{0}', space=sflag, size = 0x4, scoped, tag = 'scoped memory for tpu_custom_call.1']
    %10 = vsyncpa [#allocation3], 0
    // Predicated region
    $region2: #{tpu_custom_call.1} parent=1 // pred_check
      _
    $region3: #{tpu_custom_call.1} parent=1 // pred_check_branch
      %12 = sbr.rel (0) target = $region5
    $region4: #{tpu_custom_call.1} parent=1 // pred_region
      _
    $region5: #{tpu_custom_call.1} parent=1 // pred_fallthru
      _
    // Predicated region
    $region6: #{tpu_custom_call.1} parent=1 // pred_check
      _
    $region7: #{tpu_custom_call.1} parent=1 // pred_check_branch
      %14 = sbr.rel (0) target = $region9
    $region8: #{tpu_custom_call.1} parent=1 // pred_region
      _
    $region9: #{tpu_custom_call.1} parent=1 // pred_fallthru
      _
    // Predicated region
    $region10: #{tpu_custom_call.1} parent=1 // pred_check
      _
    $region11: #{tpu_custom_call.1} parent=1 // pred_check_branch
      %16 = sbr.rel (0) target = $region13
    $region12: #{tpu_custom_call.1} parent=1 // pred_region
      _
    $region13: #{tpu_custom_call.1} parent=1 // pred_fallthru
      _
    // Predicated region
    $region14: #{tpu_custom_call.1} parent=1 // pred_check
      _
    $region15: #{tpu_custom_call.1} parent=1 // pred_check_branch
      %18 = sbr.rel (0) target = $region17
    $region16: #{tpu_custom_call.1} parent=1 // pred_region
      _
    $region17: #{tpu_custom_call.1} parent=1 // pred_fallthru
      _
    // Predicated region
    $region18: #{tpu_custom_call.1} parent=1 // pred_check
      _
    $region19: #{tpu_custom_call.1} parent=1 // pred_check_branch
      %20 = sbr.rel (0) target = $region21
    $region20: #{tpu_custom_call.1} parent=1 // pred_region
      _
    $region21: #{tpu_custom_call.1} parent=1 // pred_fallthru
      _
    %v21 = vld [vmem:[%s0] sm:$0xff]
    %v22 = vld [vmem:[%s0 + $0x8] sm:$0xff]
    %v23 = vld [vmem:[%s1] sm:$0xff]
    %v24 = vld [vmem:[%s1 + $0x8] sm:$0xff]
    %v25 = vld [vmem:[%s2] sm:$0x1]
    %v27 = vperm.slane %v25, 0
    %vm29 = vcmask 130048
    %v31 = vsel %vm29, %v21, 0
    %v34 = vsel %vm29, %v22, 0
    %36 = vmatpush.msra.mxu0 0.0
    %37 = vmatpush.msra.mxu0 0.0
    %38 = vmatpush.msra.mxu0 0.0
    %39 = vmatpush.msra.mxu0 0.0
    %40 = vmatpush.msra.mxu0 0.0
    %41 = vmatpush.msra.mxu0 0.0
    %42 = vmatpush.msra.mxu0 0.0
    %43 = vmatpush.msra.mxu0 0.0
    %44 = vmatpush.msra.mxu0 0.0
    %45 = vmatpush.msra.mxu0 0.0
    %46 = vmatpush.msra.mxu0 0.0
    %47 = vmatpush.msra.mxu0 0.0
    %48 = vmatpush.msra.mxu0 0.0
    %49 = vmatpush.msra.mxu0 0.0
    %50 = vmatpush.msra.mxu0 %v24
    %51 = vmatpush.msra.mxu0 %v23
    %52 = vmatmul.f32.gmra.mxu0 %v31
    %v53 = vpop.f32.mrf.mxu0
    %v54 = vadd.f32 %v27, %v53
    %55 = vmatmul.f32.gmra.mxu0 %v34
    %v56 = vpop.f32.mrf.mxu0
    %v57 = vadd.f32 %v27, %v56
    %58 = vdwg.mxu0
    %v59 = vmul.f32 %v54, 0.70710677
    %v60 = vmul.f32 %v57, 0.70710677
    %v61 = vmul.f32 %v59, %v59
    %v62 = vmin.f32 16.0, %v61
    %v63 = vmul.f32 %v62, 2.1237322e-06
    %v64 = vadd.f32 %v63, 0.00028619796
    %v65 = vmul.f32 %v62, %v64
    %v66 = vadd.f32 %v65, 0.0036580483
    %v67 = vmul.f32 %v62, %v66
    %v68 = vadd.f32 %v67, 0.05243302
    %v69 = vmul.f32 %v62, %v68
    %v70 = vadd.f32 %v69, 0.18741608
    %v71 = vmul.f32 %v62, %v70
    %v72 = vadd.f32 %v71, 1.1283791
    %v73 = vmul.f32 %v59, %v72
    %v74 = vmul.f32 %v62, 3.8918573e-05
    %v75 = vadd.f32 %v74, 0.001143296
    %v76 = vmul.f32 %v62, %v75
    %v77 = vadd.f32 %v76, 0.014752088
    %v78 = vmul.f32 %v62, %v77
    %v79 = vadd.f32 %v78, 0.112945676
    %v80 = vmul.f32 %v62, %v79
    %v81 = vadd.f32 %v80, 0.4994258
    %v82 = vmul.f32 %v62, %v81
    %v83 = vadd.f32 %v82, 1.0
    %v84 = vrcp.pop %v83
    %v85 = vmul.f32 %v83, %v84
    %v86 = vsub.f32 1.0, %v85
    %v87 = vmul.f32 %v84, %v86
    %v88 = vadd.f32 %v84, %v87
    %vm89 = vweird.f32 %v83
    %vm90 = vweird.f32 %v84
    %vm91 = vmor %vm89, %vm90
    %v92 = vsel %vm91, %v84, %v88
    %v93 = vand.u32 2147483647, %v83
    %vm94 = vcmp.eq.f32.partialorder %v93, 8.507059e+37
    %v95 = vand.u32 %v83, 2147483648
    %v96 = vor.u32 1.1754944e-38, %v95
    %v97 = vsel %vm94, %v96, %v92
    %v98 = vmul.f32 %v73, %v97
    %v99 = vmin.f32 %v98, 1.0
    %v100 = vmax.f32 %v99, -1.0
    %v101 = vmul.f32 %v60, %v60
    %v102 = vmin.f32 16.0, %v101
    %v103 = vmul.f32 %v102, 2.1237322e-06
    %v104 = vadd.f32 %v103, 0.00028619796
    %v105 = vmul.f32 %v102, %v104
    %v106 = vadd.f32 %v105, 0.0036580483
    %v107 = vmul.f32 %v102, %v106
    %v108 = vadd.f32 %v107, 0.05243302
    %v109 = vmul.f32 %v102, %v108
    %v110 = vadd.f32 %v109, 0.18741608
    %v111 = vmul.f32 %v102, %v110
    %v112 = vadd.f32 %v111, 1.1283791
    %v113 = vmul.f32 %v60, %v112
    %v114 = vmul.f32 %v102, 3.8918573e-05
    %v115 = vadd.f32 %v114, 0.001143296
    %v116 = vmul.f32 %v102, %v115
    %v117 = vadd.f32 %v116, 0.014752088
    %v118 = vmul.f32 %v102, %v117
    %v119 = vadd.f32 %v118, 0.112945676
    %v120 = vmul.f32 %v102, %v119
    %v121 = vadd.f32 %v120, 0.4994258
    %v122 = vmul.f32 %v102, %v121
    %v123 = vadd.f32 %v122, 1.0
    %v124 = vrcp.pop %v123
    %v125 = vmul.f32 %v123, %v124
    %v126 = vsub.f32 1.0, %v125
    %v127 = vmul.f32 %v124, %v126
    %v128 = vadd.f32 %v124, %v127
    %vm129 = vweird.f32 %v123
    %vm130 = vweird.f32 %v124
    %vm131 = vmor %vm129, %vm130
    %v132 = vsel %vm131, %v124, %v128
    %v133 = vand.u32 2147483647, %v123
    %vm134 = vcmp.eq.f32.partialorder %v133, 8.507059e+37
    %v135 = vand.u32 %v123, 2147483648
    %v136 = vor.u32 1.1754944e-38, %v135
    %v137 = vsel %vm134, %v136, %v132
    %v138 = vmul.f32 %v113, %v137
    %v139 = vmin.f32 %v138, 1.0
    %v140 = vmax.f32 %v139, -1.0
    %v141 = vadd.f32 %v100, 1.0
    %v142 = vadd.f32 %v140, 1.0
    %v143 = vmul.f32 %v141, 0.5
    %v144 = vmul.f32 %v142, 0.5
    %v145 = vmul.f32 %v54, %v143
    %v146 = vmul.f32 %v57, %v144
    %v147 = vld [vmem:[%s3] sm:$0xff]
    %v148 = vld [vmem:[%s3 + $0x8] sm:$0xff]
    %v149 = vld [vmem:[%s3 + $0x10] sm:$0xff]
    %v150 = vld [vmem:[%s3 + $0x18] sm:$0xff]
    %v151 = vld [vmem:[%s4] sm:$0x1]
    %v153 = vperm.slane %v151, 0
    %vm155 = vcmask 261120
    %v157 = vsel %vm155, %v145, 0
    %v160 = vsel %vm155, %v146, 0
    %162 = vmatpush.msra.mxu0 0.0
    %163 = vmatpush.msra.mxu0 0.0
    %164 = vmatpush.msra.mxu0 0.0
    %165 = vmatpush.msra.mxu0 0.0
    %166 = vmatpush.msra.mxu0 0.0
    %167 = vmatpush.msra.mxu0 0.0
    %168 = vmatpush.msra.mxu0 0.0
    %169 = vmatpush.msra.mxu0 0.0
    %170 = vmatpush.msra.mxu0 0.0
    %171 = vmatpush.msra.mxu0 0.0
    %172 = vmatpush.msra.mxu0 0.0
    %173 = vmatpush.msra.mxu0 0.0
    %174 = vmatpush.msra.mxu0 %v150
    %175 = vmatpush.msra.mxu0 %v149
    %176 = vmatpush.msra.mxu0 %v148
    %177 = vmatpush.msra.mxu0 %v147
    %178 = vmatmul.f32.gmra.mxu0 %v157
    %v179 = vpop.f32.mrf.mxu0
    %v180 = vadd.f32 %v153, %v179
    %181 = vmatmul.f32.gmra.mxu0 %v160
    %v182 = vpop.f32.mrf.mxu0
    %v183 = vadd.f32 %v153, %v182
    %184 = vdwg.mxu0
    %185 = vst.msk [vmem:[#allocation2] sm:$0xff] %vm29, %v180
    %186 = vst.msk [vmem:[#allocation2 + $0x8] sm:$0xff] %vm29, %v183
    // Predicated region
    $region22: #{tpu_custom_call.1} parent=1 // pred_check
      _
    $region23: #{tpu_custom_call.1} parent=1 // pred_check_branch
      %188 = sbr.rel (0) target = $region25
    $region24: #{tpu_custom_call.1} parent=1 // pred_region
      %190 = vsyncadd [#allocation3], 0
      %s191 = sshll.u32 [#allocation2], 4
      %s192 = int_to_ptr.vmem [resolvable:$true] %s191
      %s193 = sshll.u32 %s5, 4
      %s194 = int_to_ptr.hbm [resolvable:$true] %s193
      %199 = dma.vmem_to_hbm [thread:$0]  %s192, 256, %s194, [#allocation3], 128, 128, 8
    $region25: #{tpu_custom_call.1} parent=1 // pred_fallthru
      _
    // Predicated region
    $region26: #{tpu_custom_call.1} parent=1 // pred_check
      _
    $region27: #{tpu_custom_call.1} parent=1 // pred_check_branch
      %201 = sbr.rel (0) target = $region29
    $region28: #{tpu_custom_call.1} parent=1 // pred_region
      %203 = dma.done [#allocation3], 256
    $region29: #{tpu_custom_call.1} parent=1 // pred_fallthru
      _
    %204 = vsyncpa [#allocation3], 1

</llo_original>
